<compile_context>
chip_gen: v5e
topology: v5e:2x2
jax: 0.10.0
libtpu: 0.0.40
codegen_flags: <defaults>
</compile_context>

<pallas_src>
import jax
import jax.numpy as jnp
from jax.experimental import pallas as pl
from jax.experimental.pallas import tpu as pltpu


def policy_mlp_kernel(x_ref, w1_ref, b1_ref, w2_ref, b2_ref, w3_ref, b3_ref, o_ref):
    x = x_ref[...]  # (TB, in_dim) f32

    # fc1 + ReLU
    h1 = jnp.dot(x, w1_ref[...], preferred_element_type=jnp.float32) + b1_ref[...]
    h1 = jnp.maximum(h1, 0.0)

    # fc2 + ReLU
    h2 = jnp.dot(h1, w2_ref[...], preferred_element_type=jnp.float32) + b2_ref[...]
    h2 = jnp.maximum(h2, 0.0)

    # fc3 + numerically-stable softmax over the (unpadded) last dim.
    logits = jnp.dot(h2, w3_ref[...], preferred_element_type=jnp.float32) + b3_ref[...]
    m = jnp.max(logits, axis=-1, keepdims=True)
    e = jnp.exp(logits - m)
    denom = jnp.sum(e, axis=-1, keepdims=True)
    # Exact divide (not approx reciprocal) so probabilities sum to 1 to f32 precision.
    o_ref[...] = (e / denom).astype(o_ref.dtype)


def _round_up(n, m):
    return ((n + m - 1) // m) * m


def policy_network_forward(x, params, *, block_batch=1024):
    """x: (B, input_dim) float32. params: dict of w1,b1,w2,b2,w3,b3 (logical shapes)."""
    w1, b1 = params["w1"], params["b1"]
    w2, b2 = params["w2"], params["b2"]
    w3, b3 = params["w3"], params["b3"]

    x = x.astype(jnp.float32)
    B, in_dim = x.shape
    hid = w1.shape[1]
    out_dim = w3.shape[1]

    SUB = 8  # sublane granularity for the batch (second-to-last) dim

    # Batch tile: multiple of 8 sublanes, capped at block_batch, and chosen so a
    # large batch gives >= 2 grid steps (both v7x TensorCores get work).
    b8 = _round_up(max(B, SUB), SUB)
    half = _round_up(pl.cdiv(b8, 2), SUB)
    tb = max(SUB, min(_round_up(block_batch, SUB), half))
    b_pad = _round_up(b8, tb)
    grid = (b_pad // tb,)

    # Only the batch dim ever needs padding (zero rows -> valid, discarded softmax rows).
    if b_pad == B:
        xp = x
    else:
        xp = jnp.zeros((b_pad, in_dim), jnp.float32).at[:B].set(x)

    # Advisory cost: logical dims, weights counted once (they stay VMEM-resident).
    flops = 2 * B * (in_dim * hid + hid * hid + hid * out_dim)
    bytes_accessed = 4 * (B * in_dim + in_dim * hid + hid
                          + hid * hid + hid + hid * out_dim + out_dim
                          + B * out_dim)
    cost = pl.CostEstimate(flops=flops,
                           transcendentals=B * out_dim,
                           bytes_accessed=bytes_accessed)

    out_padded = pl.pallas_call(
        policy_mlp_kernel,
        out_shape=jax.ShapeDtypeStruct((b_pad, out_dim), jnp.float32),
        grid=grid,
        in_specs=[
            pl.BlockSpec((tb, in_dim), lambda i: (i, 0)),    # x: streamed over batch
            pl.BlockSpec((in_dim, hid), lambda i: (0, 0)),   # weights/biases: VMEM-resident
            pl.BlockSpec((1, hid), lambda i: (0, 0)),
            pl.BlockSpec((hid, hid), lambda i: (0, 0)),
            pl.BlockSpec((1, hid), lambda i: (0, 0)),
            pl.BlockSpec((hid, out_dim), lambda i: (0, 0)),
            pl.BlockSpec((1, out_dim), lambda i: (0, 0)),
        ],
        out_specs=pl.BlockSpec((tb, out_dim), lambda i: (i, 0)),
        compiler_params=pltpu.CompilerParams(
            dimension_semantics=("parallel",)),
        cost_estimate=cost,
    )(xp, w1, b1, w2, b2, w3, b3)

    return out_padded[:B]


def init_policy_params(key, input_dim, hidden_dim, output_dim):
    """Deterministic init mirroring nn.Linear's U(-1/sqrt(fan_in), 1/sqrt(fan_in))."""
    ks = jax.random.split(key, 6)

    def linear(kw, kb, fan_in, fan_out):
        bound = 1.0 / jnp.sqrt(jnp.float32(fan_in))
        w = jax.random.uniform(kw, (fan_in, fan_out), jnp.float32, -bound, bound)
        b = jax.random.uniform(kb, (1, fan_out), jnp.float32, -bound, bound)
        return w, b

    w1, b1 = linear(ks[0], ks[1], input_dim, hidden_dim)
    w2, b2 = linear(ks[2], ks[3], hidden_dim, hidden_dim)
    w3, b3 = linear(ks[4], ks[5], hidden_dim, output_dim)
    return {"w1": w1, "b1": b1, "w2": w2, "b2": b2, "w3": w3, "b3": b3}


def _reference(x, p):
    h1 = jnp.maximum(x @ p["w1"] + p["b1"], 0.0)
    h2 = jnp.maximum(h1 @ p["w2"] + p["b2"], 0.0)
    return jax.nn.softmax(h2 @ p["w3"] + p["b3"], axis=-1)


if __name__ == "__main__":
    key = jax.random.PRNGKey(0)
    k_x, k_x2, k_p = jax.random.split(key, 3)

    batch, input_dim, hidden_dim, output_dim = 2, 16, 32, 8
    params = init_policy_params(k_p, input_dim, hidden_dim, output_dim)

    # Small-batch check (module's nominal use: single grid step).
    x = jax.random.normal(k_x, (batch, input_dim), jnp.float32)
    out = jax.block_until_ready(policy_network_forward(x, params))
    ref = _reference(x, params)
    assert out.shape == (batch, output_dim)
    assert jnp.allclose(out, ref, atol=1e-3, rtol=1e-3), "mismatch vs reference (small batch)"
    assert jnp.allclose(jnp.sum(out, axis=-1), 1.0, atol=1e-3)

    # Larger, non-aligned batch: exercises the multi-step batch grid with resident weights.
    big_batch = 300
    x2 = jax.random.normal(k_x2, (big_batch, input_dim), jnp.float32)
    out2 = jax.block_until_ready(policy_network_forward(x2, params, block_batch=128))
    ref2 = _reference(x2, params)
    assert out2.shape == (big_batch, output_dim)
    assert jnp.allclose(out2, ref2, atol=1e-3, rtol=1e-3), "mismatch vs reference (big batch)"
    assert jnp.allclose(jnp.sum(out2, axis=-1), 1.0, atol=1e-3)

    print("KERNEL_OK")
</pallas_src>

<mosaic_0001>
module attributes {stable_mosaic.version = 11 : i64} {
  func.func @policy_mlp_kernel(%arg0: i32, %arg1: memref<8x16xf32, #tpu.memory_space<vmem>>, %arg2: memref<16x32xf32, #tpu.memory_space<vmem>>, %arg3: memref<1x32xf32, #tpu.memory_space<vmem>>, %arg4: memref<32x32xf32, #tpu.memory_space<vmem>>, %arg5: memref<1x32xf32, #tpu.memory_space<vmem>>, %arg6: memref<32x8xf32, #tpu.memory_space<vmem>>, %arg7: memref<1x8xf32, #tpu.memory_space<vmem>>, %arg8: memref<8x8xf32, #tpu.memory_space<vmem>>) attributes {dimension_semantics = [#tpu.dimension_semantics<parallel>], iteration_bounds = array<i64: 1>, scalar_prefetch = 0 : i64, scratch_operands = 0 : i64, tpu.core_type = #tpu.core_type<tc>, window_params = [{transform_indices = @transform_0, window_bounds = array<i64: 8, 16>}, {pipeline_mode = #tpu.pipeline_mode<synchronous>, transform_indices = @transform_1, window_bounds = array<i64: 16, 32>}, {pipeline_mode = #tpu.pipeline_mode<synchronous>, transform_indices = @transform_2, window_bounds = array<i64: 1, 32>}, {pipeline_mode = #tpu.pipeline_mode<synchronous>, transform_indices = @transform_3, window_bounds = array<i64: 32, 32>}, {pipeline_mode = #tpu.pipeline_mode<synchronous>, transform_indices = @transform_4, window_bounds = array<i64: 1, 32>}, {pipeline_mode = #tpu.pipeline_mode<synchronous>, transform_indices = @transform_5, window_bounds = array<i64: 32, 8>}, {pipeline_mode = #tpu.pipeline_mode<synchronous>, transform_indices = @transform_6, window_bounds = array<i64: 1, 8>}, {transform_indices = @transform_7, window_bounds = array<i64: 8, 8>}]} {
    %c0 = arith.constant 0 : index
    %c0_0 = arith.constant 0 : index
    %0 = vector.load %arg1[%c0, %c0_0] : memref<8x16xf32, #tpu.memory_space<vmem>>, vector<8x16xf32>
    %c0_1 = arith.constant 0 : index
    %c0_2 = arith.constant 0 : index
    %1 = vector.load %arg2[%c0_1, %c0_2] : memref<16x32xf32, #tpu.memory_space<vmem>>, vector<16x32xf32>
    %cst = arith.constant dense<0.000000e+00> : vector<8x32xf32>
    %2 = tpu.matmul %0, %1, %cst {dimension_numbers = #tpu.dot_dimension_numbers<[1], [0], [0], [1], [0, 0, 1, 1], [], []>} : vector<8x16xf32>, vector<16x32xf32>, vector<8x32xf32> -> vector<8x32xf32>
    %c0_3 = arith.constant 0 : index
    %c0_4 = arith.constant 0 : index
    %3 = vector.load %arg3[%c0_3, %c0_4] : memref<1x32xf32, #tpu.memory_space<vmem>>, vector<1x32xf32>
    %4 = vector.broadcast %3 : vector<1x32xf32> to vector<8x32xf32>
    %5 = arith.addf %2, %4 : vector<8x32xf32>
    %cst_5 = arith.constant 0.000000e+00 : f32
    %6 = vector.broadcast %cst_5 : f32 to vector<8x32xf32>
    %7 = arith.maximumf %5, %6 : vector<8x32xf32>
    %c0_6 = arith.constant 0 : index
    %c0_7 = arith.constant 0 : index
    %8 = vector.load %arg4[%c0_6, %c0_7] : memref<32x32xf32, #tpu.memory_space<vmem>>, vector<32x32xf32>
    %cst_8 = arith.constant dense<0.000000e+00> : vector<8x32xf32>
    %9 = tpu.matmul %7, %8, %cst_8 {dimension_numbers = #tpu.dot_dimension_numbers<[1], [0], [0], [1], [0, 0, 1, 1], [], []>} : vector<8x32xf32>, vector<32x32xf32>, vector<8x32xf32> -> vector<8x32xf32>
    %c0_9 = arith.constant 0 : index
    %c0_10 = arith.constant 0 : index
    %10 = vector.load %arg5[%c0_9, %c0_10] : memref<1x32xf32, #tpu.memory_space<vmem>>, vector<1x32xf32>
    %11 = vector.broadcast %10 : vector<1x32xf32> to vector<8x32xf32>
    %12 = arith.addf %9, %11 : vector<8x32xf32>
    %cst_11 = arith.constant 0.000000e+00 : f32
    %13 = vector.broadcast %cst_11 : f32 to vector<8x32xf32>
    %14 = arith.maximumf %12, %13 : vector<8x32xf32>
    %c0_12 = arith.constant 0 : index
    %c0_13 = arith.constant 0 : index
    %15 = vector.load %arg6[%c0_12, %c0_13] : memref<32x8xf32, #tpu.memory_space<vmem>>, vector<32x8xf32>
    %cst_14 = arith.constant dense<0.000000e+00> : vector<8x8xf32>
    %16 = tpu.matmul %14, %15, %cst_14 {dimension_numbers = #tpu.dot_dimension_numbers<[1], [0], [0], [1], [0, 0, 1, 1], [], []>} : vector<8x32xf32>, vector<32x8xf32>, vector<8x8xf32> -> vector<8x8xf32>
    %c0_15 = arith.constant 0 : index
    %c0_16 = arith.constant 0 : index
    %17 = vector.load %arg7[%c0_15, %c0_16] : memref<1x8xf32, #tpu.memory_space<vmem>>, vector<1x8xf32>
    %18 = vector.broadcast %17 : vector<1x8xf32> to vector<8x8xf32>
    %19 = arith.addf %16, %18 : vector<8x8xf32>
    %cst_17 = arith.constant dense<0xFF800000> : vector<8xf32>
    %20 = vector.multi_reduction <maximumf>, %19, %cst_17 [1] : vector<8x8xf32> to vector<8xf32>
    %21 = vector.shape_cast %20 : vector<8xf32> to vector<8x1xf32>
    %22 = vector.broadcast %21 : vector<8x1xf32> to vector<8x8xf32>
    %23 = arith.subf %19, %22 : vector<8x8xf32>
    %24 = math.exp %23 : vector<8x8xf32>
    %cst_18 = arith.constant dense<0.000000e+00> : vector<8xf32>
    %25 = vector.multi_reduction <add>, %24, %cst_18 [1] : vector<8x8xf32> to vector<8xf32>
    %26 = vector.shape_cast %25 : vector<8xf32> to vector<8x1xf32>
    %27 = vector.broadcast %26 : vector<8x1xf32> to vector<8x8xf32>
    %28 = arith.divf %24, %27 : vector<8x8xf32>
    %c0_19 = arith.constant 0 : index
    %c0_20 = arith.constant 0 : index
    %29 = vector.load %arg8[%c0_19, %c0_20] : memref<8x8xf32, #tpu.memory_space<vmem>>, vector<8x8xf32>
    tpu.vector_store %arg8[%c0_19, %c0_20], %28 {strides = array<i32>} : memref<8x8xf32, #tpu.memory_space<vmem>>, vector<8x8xf32>,
    return
  }
  func.func @transform_0(%arg0: i32) -> (i32, i32) {
    %c0_i32 = arith.constant 0 : i32
    %c0_i32_0 = arith.constant 0 : i32
    return %arg0, %c0_i32 : i32, i32
  }
  func.func @transform_1(%arg0: i32) -> (i32, i32) {
    %c0_i32 = arith.constant 0 : i32
    %c0_i32_0 = arith.constant 0 : i32
    %c0_i32_1 = arith.constant 0 : i32
    return %c0_i32, %c0_i32_0 : i32, i32
  }
  func.func @transform_2(%arg0: i32) -> (i32, i32) {
    %c0_i32 = arith.constant 0 : i32
    %c0_i32_0 = arith.constant 0 : i32
    %c0_i32_1 = arith.constant 0 : i32
    return %c0_i32, %c0_i32_0 : i32, i32
  }
  func.func @transform_3(%arg0: i32) -> (i32, i32) {
    %c0_i32 = arith.constant 0 : i32
    %c0_i32_0 = arith.constant 0 : i32
    %c0_i32_1 = arith.constant 0 : i32
    return %c0_i32, %c0_i32_0 : i32, i32
  }
  func.func @transform_4(%arg0: i32) -> (i32, i32) {
    %c0_i32 = arith.constant 0 : i32
    %c0_i32_0 = arith.constant 0 : i32
    %c0_i32_1 = arith.constant 0 : i32
    return %c0_i32, %c0_i32_0 : i32, i32
  }
  func.func @transform_5(%arg0: i32) -> (i32, i32) {
    %c0_i32 = arith.constant 0 : i32
    %c0_i32_0 = arith.constant 0 : i32
    %c0_i32_1 = arith.constant 0 : i32
    return %c0_i32, %c0_i32_0 : i32, i32
  }
  func.func @transform_6(%arg0: i32) -> (i32, i32) {
    %c0_i32 = arith.constant 0 : i32
    %c0_i32_0 = arith.constant 0 : i32
    %c0_i32_1 = arith.constant 0 : i32
    return %c0_i32, %c0_i32_0 : i32, i32
  }
  func.func @transform_7(%arg0: i32) -> (i32, i32) {
    %c0_i32 = arith.constant 0 : i32
    %c0_i32_0 = arith.constant 0 : i32
    return %arg0, %c0_i32 : i32, i32
  }
}

</mosaic_0001>

<llo_original>
// kernel: tpu_custom_call.1
$region0: #{tpu_custom_call.1}
  #allocation0 [shape = 'u32[]', space=smem, size = 0x4, offset = 0x4, fixed_abs, tag = 'smem constant byte address 0x4 - core index']
  #allocation1 [shape = 'u32[72,128]{1,0:T(1,128)}', space=vmem, size = 0x9000, scoped, tag = 'internal scratch']
  %s0 = inlined_call_operand.vmem [shape: f32[8,16], index: 0, kind: input, shape index: {}]
  %s1 = inlined_call_operand.hbm [shape: f32[16,32], index: 1, kind: input, shape index: {}]
  %s2 = inlined_call_operand.vmem [shape: f32[1,32], index: 2, kind: input, shape index: {}]
  %s3 = inlined_call_operand.vmem [shape: f32[32,32], index: 3, kind: input, shape index: {}]
  %s4 = inlined_call_operand.vmem [shape: f32[1,32], index: 4, kind: input, shape index: {}]
  %s5 = inlined_call_operand.vmem [shape: f32[32,8], index: 5, kind: input, shape index: {}]
  %s6 = inlined_call_operand.vmem [shape: f32[1,8], index: 6, kind: input, shape index: {}]
  %s7 = inlined_call_operand.hbm [shape: f32[8,8], index: 7, kind: output, shape index: {}]
  %s8 = sld [smem:[#allocation0]]
  $region42: #{tpu_custom_call.1} parent=0
    _
  %s10 = ssub.s32 1, %s8
  %s11 = scalar_select 0, %s10, %s8
  $region1: #{tpu_custom_call.1} parent=0
    #allocation2 [shape = 'u8[8192]{0}', space=vmem, size = 0x2000, scoped, tag = 'input window, operand 1, single buffered']
    #allocation3 [shape = 's32[1]{0}', space=sflag, size = 0x4, scoped, tag = 'scoped memory for tpu_custom_call.1']
    #allocation4 [shape = 's32[1]{0}', space=sflag, size = 0x4, scoped, tag = 'scoped memory for tpu_custom_call.1']
    #allocation5 [shape = 'u8[4096]{0}', space=vmem, size = 0x1000, scoped, tag = 'output window, operand 0, single buffered']
    %12 = vsyncpa [#allocation3], 0
    %13 = vsyncpa [#allocation4], 0
    // Predicated region
    $region2: #{tpu_custom_call.1} parent=1 // pred_check
      _
    $region3: #{tpu_custom_call.1} parent=1 // pred_check_branch
      %15 = sbr.rel (0) target = $region5
    $region4: #{tpu_custom_call.1} parent=1 // pred_region
      _
    $region5: #{tpu_custom_call.1} parent=1 // pred_fallthru
      _
    // Predicated region
    $region6: #{tpu_custom_call.1} parent=1 // pred_check
      _
    $region7: #{tpu_custom_call.1} parent=1 // pred_check_branch
      %17 = sbr.rel (0) target = $region9
    $region8: #{tpu_custom_call.1} parent=1 // pred_region
      %19 = vsyncadd [#allocation3], 0
      %s20 = sshll.u32 %s1, 4
      %s21 = int_to_ptr.hbm [resolvable:$true] %s20
      %s22 = sshll.u32 [#allocation2], 4
      %s23 = int_to_ptr.vmem [resolvable:$true] %s22
      %28 = dma.hbm_to_vmem [thread:$0]  %s21, 256, %s23, [#allocation3], 128, 128, 8
    $region9: #{tpu_custom_call.1} parent=1 // pred_fallthru
      _
    // Predicated region
    $region10: #{tpu_custom_call.1} parent=1 // pred_check
      _
    $region11: #{tpu_custom_call.1} parent=1 // pred_check_branch
      %30 = sbr.rel (0) target = $region13
    $region12: #{tpu_custom_call.1} parent=1 // pred_region
      _
    $region13: #{tpu_custom_call.1} parent=1 // pred_fallthru
      _
    // Predicated region
    $region14: #{tpu_custom_call.1} parent=1 // pred_check
      _
    $region15: #{tpu_custom_call.1} parent=1 // pred_check_branch
      %32 = sbr.rel (0) target = $region17
    $region16: #{tpu_custom_call.1} parent=1 // pred_region
      _
    $region17: #{tpu_custom_call.1} parent=1 // pred_fallthru
      _
    // Predicated region
    $region18: #{tpu_custom_call.1} parent=1 // pred_check
      _
    $region19: #{tpu_custom_call.1} parent=1 // pred_check_branch
      %34 = sbr.rel (0) target = $region21
    $region20: #{tpu_custom_call.1} parent=1 // pred_region
      _
    $region21: #{tpu_custom_call.1} parent=1 // pred_fallthru
      _
    // Predicated region
    $region22: #{tpu_custom_call.1} parent=1 // pred_check
      _
    $region23: #{tpu_custom_call.1} parent=1 // pred_check_branch
      %36 = sbr.rel (0) target = $region25
    $region24: #{tpu_custom_call.1} parent=1 // pred_region
      _
    $region25: #{tpu_custom_call.1} parent=1 // pred_fallthru
      _
    // Predicated region
    $region26: #{tpu_custom_call.1} parent=1 // pred_check
      _
    $region27: #{tpu_custom_call.1} parent=1 // pred_check_branch
      %38 = sbr.rel (0) target = $region29
    $region28: #{tpu_custom_call.1} parent=1 // pred_region
      _
    $region29: #{tpu_custom_call.1} parent=1 // pred_fallthru
      _
    // Predicated region
    $region30: #{tpu_custom_call.1} parent=1 // pred_check
      _
    $region31: #{tpu_custom_call.1} parent=1 // pred_check_branch
      %40 = sbr.rel (0) target = $region33
    $region32: #{tpu_custom_call.1} parent=1 // pred_region
      %42 = dma.done [#allocation3], 256
    $region33: #{tpu_custom_call.1} parent=1 // pred_fallthru
      _
    %v43 = vld [vmem:[%s0] sm:$0xff]
    %v44 = vld [vmem:[#allocation2] sm:$0xff]
    %v45 = vld [vmem:[#allocation2 + $0x8] sm:$0xff]
    %v46 = vld [vmem:[%s2] sm:$0x1]
    %v48 = vperm.slane %v46, 0
    %vm50 = vcmask 130048
    %v52 = vsel %vm50, %v43, 0
    %54 = vmatpush.msra.mxu0 0.0
    %55 = vmatpush.msra.mxu0 0.0
    %56 = vmatpush.msra.mxu0 0.0
    %57 = vmatpush.msra.mxu0 0.0
    %58 = vmatpush.msra.mxu0 0.0
    %59 = vmatpush.msra.mxu0 0.0
    %60 = vmatpush.msra.mxu0 0.0
    %61 = vmatpush.msra.mxu0 0.0
    %62 = vmatpush.msra.mxu0 0.0
    %63 = vmatpush.msra.mxu0 0.0
    %64 = vmatpush.msra.mxu0 0.0
    %65 = vmatpush.msra.mxu0 0.0
    %66 = vmatpush.msra.mxu0 0.0
    %67 = vmatpush.msra.mxu0 0.0
    %68 = vmatpush.msra.mxu0 %v45
    %69 = vmatpush.msra.mxu0 %v44
    %70 = vmatmul.f32.gmra.mxu0 %v52
    %v71 = vpop.f32.mrf.mxu0
    %v72 = vadd.f32 %v48, %v71
    %73 = vdwg.mxu0
    %v74 = vmax.f32 %v72, 0.0
    %v75 = vld [vmem:[%s3] sm:$0xff]
    %v76 = vld [vmem:[%s3 + $0x8] sm:$0xff]
    %v77 = vld [vmem:[%s3 + $0x10] sm:$0xff]
    %v78 = vld [vmem:[%s3 + $0x18] sm:$0xff]
    %v79 = vld [vmem:[%s4] sm:$0x1]
    %v81 = vperm.slane %v79, 0
    %vm83 = vcmask 261120
    %v85 = vsel %vm83, %v74, 0
    %87 = vmatpush.msra.mxu0 0.0
    %88 = vmatpush.msra.mxu0 0.0
    %89 = vmatpush.msra.mxu0 0.0
    %90 = vmatpush.msra.mxu0 0.0
    %91 = vmatpush.msra.mxu0 0.0
    %92 = vmatpush.msra.mxu0 0.0
    %93 = vmatpush.msra.mxu0 0.0
    %94 = vmatpush.msra.mxu0 0.0
    %95 = vmatpush.msra.mxu0 0.0
    %96 = vmatpush.msra.mxu0 0.0
    %97 = vmatpush.msra.mxu0 0.0
    %98 = vmatpush.msra.mxu0 0.0
    %99 = vmatpush.msra.mxu0 %v78
    %100 = vmatpush.msra.mxu0 %v77
    %101 = vmatpush.msra.mxu0 %v76
    %102 = vmatpush.msra.mxu0 %v75
    %103 = vmatmul.f32.gmra.mxu0 %v85
    %v104 = vpop.f32.mrf.mxu0
    %v105 = vadd.f32 %v81, %v104
    %106 = vdwg.mxu0
    %v107 = vmax.f32 %v105, 0.0
    %v108 = vld [vmem:[%s5] sm:$0xff]
    %v109 = vld [vmem:[%s5 + $0x8] sm:$0xff]
    %v110 = vld [vmem:[%s5 + $0x10] sm:$0xff]
    %v111 = vld [vmem:[%s5 + $0x18] sm:$0xff]
    %v112 = vld [vmem:[%s6] sm:$0x1]
    %v114 = vperm.slane %v112, 0
    %v117 = vsel %vm83, %v107, 0
    %119 = vmatpush.msra.mxu0 0.0
    %120 = vmatpush.msra.mxu0 0.0
    %121 = vmatpush.msra.mxu0 0.0
    %122 = vmatpush.msra.mxu0 0.0
    %123 = vmatpush.msra.mxu0 0.0
    %124 = vmatpush.msra.mxu0 0.0
    %125 = vmatpush.msra.mxu0 0.0
    %126 = vmatpush.msra.mxu0 0.0
    %127 = vmatpush.msra.mxu0 0.0
    %128 = vmatpush.msra.mxu0 0.0
    %129 = vmatpush.msra.mxu0 0.0
    %130 = vmatpush.msra.mxu0 0.0
    %131 = vmatpush.msra.mxu0 %v111
    %132 = vmatpush.msra.mxu0 %v110
    %133 = vmatpush.msra.mxu0 %v109
    %134 = vmatpush.msra.mxu0 %v108
    %135 = vmatmul.f32.gmra.mxu0 %v117
    %v136 = vpop.f32.mrf.mxu0
    %v137 = vadd.f32 %v114, %v136
    %138 = vdwg.mxu0
    %vm139 = vcmask 64512
    %v140 = vsel %vm139, %v137, -inf
    %141 = vmax.xlane.f32.xlu0 %v140
    %v142 = vpop.xlane.xlu0 %141
    %v143 = vsub.f32 %v137, %v142
    %v144 = vmul.f32 %v143, 1.442695
    %v145 = vpow.pop %v144
    %v146 = vsel %vm139, %v145, 0.0
    %147 = vadd.xlane.f32.xlu0 %v146
    %v148 = vpop.xlane.xlu0 %147
    %v149 = vrcp.pop %v148
    %v150 = vmul.f32 %v148, %v149
    %v151 = vsub.f32 1.0, %v150
    %v152 = vmul.f32 %v149, %v151
    %v153 = vadd.f32 %v149, %v152
    %vm154 = vweird.f32 %v148
    %vm155 = vweird.f32 %v149
    %vm156 = vmor %vm154, %vm155
    %v157 = vsel %vm156, %v149, %v153
    %v158 = vand.u32 2147483647, %v148
    %vm159 = vcmp.eq.f32.partialorder %v158, 8.507059e+37
    %v160 = vand.u32 %v148, 2147483648
    %v161 = vor.u32 1.1754944e-38, %v160
    %v162 = vsel %vm159, %v161, %v157
    %v163 = vmul.f32 %v145, %v162
    %164 = vst.msk [vmem:[#allocation5] sm:$0xff] %vm139, %v163
    // Predicated region
    $region34: #{tpu_custom_call.1} parent=1 // pred_check
      _
    $region35: #{tpu_custom_call.1} parent=1 // pred_check_branch
      %166 = sbr.rel (0) target = $region37
    $region36: #{tpu_custom_call.1} parent=1 // pred_region
      %168 = vsyncadd [#allocation4], 0
      %s170 = sshll.u32 [#allocation5], 4
      %s171 = int_to_ptr.vmem [resolvable:$true] %s170
      %s172 = sshll.u32 %s7, 4
      %s173 = int_to_ptr.hbm [resolvable:$true] %s172
      %175 = dma.vmem_to_hbm [thread:$0]  %s171, 128, %s173, [#allocation4]
    $region37: #{tpu_custom_call.1} parent=1 // pred_fallthru
      _
    // Predicated region
    $region38: #{tpu_custom_call.1} parent=1 // pred_check
      _
    $region39: #{tpu_custom_call.1} parent=1 // pred_check_branch
      %177 = sbr.rel (0) target = $region41
    $region40: #{tpu_custom_call.1} parent=1 // pred_region
      %179 = dma.done [#allocation4], 128
    $region41: #{tpu_custom_call.1} parent=1 // pred_fallthru
      _
    %180 = vsyncpa [#allocation3], 1
    %181 = vsyncpa [#allocation4], 1

</llo_original>
